<compile_context>
chip_gen: v6e
topology: v6e:2x2x1
jax: 0.10.0
libtpu: 0.0.40
codegen_flags: <defaults>
</compile_context>

<pallas_src>
import functools

import jax
import jax.numpy as jnp
from jax.experimental import pallas as pl
from jax.experimental.pallas import tpu as pltpu

LANE = 128


def _round_up(x, m):
    return (x + m - 1) // m * m


def _next_char_dense_kernel(idx_ref, wf_ref, b1_ref, w2_ref, b2_ref,
                            w3_ref, b3_ref, o_ref, *, vocab):
    tm, T = idx_ref.shape          # batch tile, block_size
    TVp = wf_ref.shape[0]          # padded T*vocab rows of the fused emb@W1 table

    idx = idx_ref[...]                                               # (tm, T) int32
    lane = jax.lax.broadcasted_iota(jnp.int32, (tm, TVp), 1)         # (tm, TVp)

    # Multi-hot over the fused (position, token) axis: row b has a 1 at lane
    # t*vocab + idx[b, t] for every position t.  T is small & static -> unrolled
    # VPU compares; hot lanes for different t are disjoint, so plain adds suffice.
    mh = jnp.zeros((tm, TVp), jnp.float32)
    for t in range(T):
        target = idx[:, t:t + 1] + t * vocab                         # (tm, 1)
        mh = mh + jnp.where(lane == target, 1.0, 0.0)
    mh = mh.astype(wf_ref.dtype)                                     # bf16 0/1, exact

    # Fused embedding-gather + lin1: one MXU matmul, f32 accumulation.
    h1 = jnp.dot(mh, wf_ref[...], preferred_element_type=jnp.float32)
    h1 = jnp.sin(h1 + b1_ref[...])                                   # f32 bias + sin

    h2 = jnp.dot(h1.astype(w2_ref.dtype), w2_ref[...],
                 preferred_element_type=jnp.float32)
    h2 = jnp.sin(h2 + b2_ref[...])

    logits = jnp.dot(h2.astype(w3_ref.dtype), w3_ref[...],
                     preferred_element_type=jnp.float32) + b3_ref[...]
    o_ref[...] = logits.astype(o_ref.dtype)


def pack_params(params):
    """One-time repack: fold emb into W1, bf16 MXU operands, 128-lane padding."""
    emb = params["emb"]
    w1, b1 = params["w1"], params["b1"]
    w2, b2 = params["w2"], params["b2"]
    w3, b3 = params["w3"], params["b3"]

    V, E = emb.shape
    d_in, H1 = w1.shape
    T = d_in // E
    assert T * E == d_in, "lin1 fan-in must be block_size * emb_dim"
    H2 = w2.shape[1]
    Vout = w3.shape[1]

    H1p = _round_up(H1, LANE)
    H2p = _round_up(H2, LANE)
    Vp = _round_up(Vout, LANE)
    TV = T * V
    TVp = _round_up(TV, LANE)

    # W_fused[t*V + v, h] = sum_e emb[v, e] * w1[t*E + e, h]   (computed in f32).
    # Char-level vocab -> T*V rows stay small; the whole table lives in VMEM.
    w_fused = jnp.einsum("ve,teh->tvh", emb,
                         w1.reshape(T, E, H1)).reshape(TV, H1)

    def pad2(a, rows, cols):
        return jnp.pad(a, ((0, rows - a.shape[0]), (0, cols - a.shape[1])))

    return {
        "w_fused": pad2(w_fused, TVp, H1p).astype(jnp.bfloat16),
        "b1": pad2(b1.reshape(1, -1), 1, H1p).astype(jnp.float32),
        "w2": pad2(w2, H1p, H2p).astype(jnp.bfloat16),
        "b2": pad2(b2.reshape(1, -1), 1, H2p).astype(jnp.float32),
        "w3": pad2(w3, H2p, Vp).astype(jnp.bfloat16),
        "b3": pad2(b3.reshape(1, -1), 1, Vp).astype(jnp.float32),
        "dims": (V, T, TVp, H1p, H2p, Vp, Vout),
    }


def next_char_dense_forward(x_idx, packed):
    """Replicates NextCharDense.forward: emb -> flatten -> sin(lin1) -> sin(lin2) -> lin3."""
    V, T, TVp, H1p, H2p, Vp, Vout = packed["dims"]
    B, Tb = x_idx.shape
    assert Tb == T, "input block_size must match lin1 fan-in / emb_dim"

    # Batch tiling: big enough to feed the MXU / double-buffer id & logit DMAs;
    # always a multiple of 8 sublanes.
    TM = 256 if B >= 256 else _round_up(B, 8)
    B_pad = _round_up(B, TM)
    idx = x_idx.astype(jnp.int32)
    if B_pad != B:
        idx = jnp.pad(idx, ((0, B_pad - B), (0, 0)))   # pad rows with token 0

    def resident(shape):
        # Constant block index -> fetched once, stays VMEM-resident across the grid.
        return pl.BlockSpec(shape, lambda i: (0, 0))

    kernel = functools.partial(_next_char_dense_kernel, vocab=V)

    out = pl.pallas_call(
        kernel,
        out_shape=jax.ShapeDtypeStruct((B_pad, Vp), jnp.float32),
        grid=(B_pad // TM,),
        in_specs=[
            pl.BlockSpec((TM, T), lambda i: (i, 0)),      # token ids (int32)
            resident((TVp, H1p)), resident((1, H1p)),     # fused emb@lin1 + b1
            resident((H1p, H2p)), resident((1, H2p)),     # lin2
            resident((H2p, Vp)), resident((1, Vp)),       # lin3
        ],
        out_specs=pl.BlockSpec((TM, Vp), lambda i: (i, 0)),
        compiler_params=pltpu.CompilerParams(
            dimension_semantics=("parallel",),            # v7x: shard batch tiles over both TCs
            vmem_limit_bytes=32 * 1024 * 1024,            # explicit budget, safe on v7x's 64 MiB VMEM
        ),
    )(idx, packed["w_fused"], packed["b1"],
      packed["w2"], packed["b2"], packed["w3"], packed["b3"])

    return out[:B, :Vout]


def init_params(key, block_size, vocab_size, emb_dim, hidden_size, hidden_size_2):
    ks = jax.random.split(key, 7)
    d_in = block_size * emb_dim

    def linear(kw, kb, fan_in, fan_out):
        # PyTorch nn.Linear default: W, b ~ U(-1/sqrt(fan_in), 1/sqrt(fan_in)).
        bound = 1.0 / jnp.sqrt(jnp.float32(fan_in))
        w = jax.random.uniform(kw, (fan_in, fan_out), jnp.float32, -bound, bound)
        b = jax.random.uniform(kb, (fan_out,), jnp.float32, -bound, bound)
        return w, b

    w1, b1 = linear(ks[1], ks[2], d_in, hidden_size)
    w2, b2 = linear(ks[3], ks[4], hidden_size, hidden_size_2)
    w3, b3 = linear(ks[5], ks[6], hidden_size_2, vocab_size)
    return {
        "emb": jax.random.normal(ks[0], (vocab_size, emb_dim), jnp.float32),
        "w1": w1, "b1": b1, "w2": w2, "b2": b2, "w3": w3, "b3": b3,
    }


def reference_forward(x_idx, params):
    # Pure-f32 JAX reference mirroring the PyTorch module exactly.
    x = params["emb"][x_idx].reshape(x_idx.shape[0], -1)
    x = jnp.sin(x @ params["w1"] + params["b1"])
    x = jnp.sin(x @ params["w2"] + params["b2"])
    return x @ params["w3"] + params["b3"]


if __name__ == "__main__":
    # Small shapes consistent with the module (char-level next-token model).
    block_size = 8
    vocab_size = 32
    emb_dim = 16
    hidden_size = 64
    hidden_size_2 = 32
    batch = 8

    key = jax.random.PRNGKey(0)
    k_par, k_idx = jax.random.split(key)
    params = init_params(k_par, block_size, vocab_size, emb_dim,
                         hidden_size, hidden_size_2)
    packed = pack_params(params)
    x_idx = jax.random.randint(k_idx, (batch, block_size), 0, vocab_size,
                               dtype=jnp.int32)

    out = next_char_dense_forward(x_idx, packed)
    out = jax.block_until_ready(out)

    ref = reference_forward(x_idx, params)
    assert out.shape == (batch, vocab_size)
    # bf16 MXU operands with f32 accumulation -> loosened tolerance vs the f32 reference.
    assert jnp.allclose(out, ref, atol=5e-2, rtol=5e-2), float(jnp.max(jnp.abs(out - ref)))

    print("KERNEL_OK")
</pallas_src>

<mosaic_0001>
module attributes {stable_mosaic.version = 11 : i64} {
  func.func @_next_char_dense_kernel(%arg0: i32, %arg1: memref<8x8xi32, #tpu.memory_space<vmem>>, %arg2: memref<256x128xbf16, #tpu.memory_space<vmem>>, %arg3: memref<1x128xf32, #tpu.memory_space<vmem>>, %arg4: memref<128x128xbf16, #tpu.memory_space<vmem>>, %arg5: memref<1x128xf32, #tpu.memory_space<vmem>>, %arg6: memref<128x128xbf16, #tpu.memory_space<vmem>>, %arg7: memref<1x128xf32, #tpu.memory_space<vmem>>, %arg8: memref<8x128xf32, #tpu.memory_space<vmem>>) attributes {dimension_semantics = [#tpu.dimension_semantics<parallel>], iteration_bounds = array<i64: 1>, scalar_prefetch = 0 : i64, scratch_operands = 0 : i64, tpu.core_type = #tpu.core_type<tc>, window_params = [{transform_indices = @transform_0, window_bounds = array<i64: 8, 8>}, {pipeline_mode = #tpu.pipeline_mode<synchronous>, transform_indices = @transform_1, window_bounds = array<i64: 256, 128>}, {pipeline_mode = #tpu.pipeline_mode<synchronous>, transform_indices = @transform_2, window_bounds = array<i64: 1, 128>}, {pipeline_mode = #tpu.pipeline_mode<synchronous>, transform_indices = @transform_3, window_bounds = array<i64: 128, 128>}, {pipeline_mode = #tpu.pipeline_mode<synchronous>, transform_indices = @transform_4, window_bounds = array<i64: 1, 128>}, {pipeline_mode = #tpu.pipeline_mode<synchronous>, transform_indices = @transform_5, window_bounds = array<i64: 128, 128>}, {pipeline_mode = #tpu.pipeline_mode<synchronous>, transform_indices = @transform_6, window_bounds = array<i64: 1, 128>}, {transform_indices = @transform_7, window_bounds = array<i64: 8, 128>}]} {
    %c0 = arith.constant 0 : index
    %c0_0 = arith.constant 0 : index
    %0 = vector.load %arg1[%c0, %c0_0] : memref<8x8xi32, #tpu.memory_space<vmem>>, vector<8x8xi32>
    %1 = tpu.iota {dimensions = array<i32: 1>} : vector<8x256xi32>
    %cst = arith.constant 0.000000e+00 : f32
    %2 = vector.broadcast %cst : f32 to vector<8x256xf32>
    %3 = vector.extract_strided_slice %0 {offsets = [0, 0], sizes = [8, 1], strides = [1, 1]} : vector<8x8xi32> to vector<8x1xi32>
    %c0_i32 = arith.constant 0 : i32
    %4 = vector.broadcast %c0_i32 : i32 to vector<8x1xi32>
    %5 = arith.addi %3, %4 : vector<8x1xi32>
    %6 = vector.broadcast %5 : vector<8x1xi32> to vector<8x256xi32>
    %7 = arith.cmpi eq, %1, %6 : vector<8x256xi32>
    %cst_1 = arith.constant 1.000000e+00 : f32
    %cst_2 = arith.constant 0.000000e+00 : f32
    %8 = vector.broadcast %cst_1 : f32 to vector<8x256xf32>
    %9 = vector.broadcast %cst_2 : f32 to vector<8x256xf32>
    %10 = arith.select %7, %8, %9 : vector<8x256xi1>, vector<8x256xf32>
    %11 = arith.addf %2, %10 : vector<8x256xf32>
    %12 = vector.extract_strided_slice %0 {offsets = [0, 1], sizes = [8, 1], strides = [1, 1]} : vector<8x8xi32> to vector<8x1xi32>
    %c32_i32 = arith.constant 32 : i32
    %13 = vector.broadcast %c32_i32 : i32 to vector<8x1xi32>
    %14 = arith.addi %12, %13 : vector<8x1xi32>
    %15 = vector.broadcast %14 : vector<8x1xi32> to vector<8x256xi32>
    %16 = arith.cmpi eq, %1, %15 : vector<8x256xi32>
    %cst_3 = arith.constant 1.000000e+00 : f32
    %cst_4 = arith.constant 0.000000e+00 : f32
    %17 = vector.broadcast %cst_3 : f32 to vector<8x256xf32>
    %18 = vector.broadcast %cst_4 : f32 to vector<8x256xf32>
    %19 = arith.select %16, %17, %18 : vector<8x256xi1>, vector<8x256xf32>
    %20 = arith.addf %11, %19 : vector<8x256xf32>
    %21 = vector.extract_strided_slice %0 {offsets = [0, 2], sizes = [8, 1], strides = [1, 1]} : vector<8x8xi32> to vector<8x1xi32>
    %c64_i32 = arith.constant 64 : i32
    %22 = vector.broadcast %c64_i32 : i32 to vector<8x1xi32>
    %23 = arith.addi %21, %22 : vector<8x1xi32>
    %24 = vector.broadcast %23 : vector<8x1xi32> to vector<8x256xi32>
    %25 = arith.cmpi eq, %1, %24 : vector<8x256xi32>
    %cst_5 = arith.constant 1.000000e+00 : f32
    %cst_6 = arith.constant 0.000000e+00 : f32
    %26 = vector.broadcast %cst_5 : f32 to vector<8x256xf32>
    %27 = vector.broadcast %cst_6 : f32 to vector<8x256xf32>
    %28 = arith.select %25, %26, %27 : vector<8x256xi1>, vector<8x256xf32>
    %29 = arith.addf %20, %28 : vector<8x256xf32>
    %30 = vector.extract_strided_slice %0 {offsets = [0, 3], sizes = [8, 1], strides = [1, 1]} : vector<8x8xi32> to vector<8x1xi32>
    %c96_i32 = arith.constant 96 : i32
    %31 = vector.broadcast %c96_i32 : i32 to vector<8x1xi32>
    %32 = arith.addi %30, %31 : vector<8x1xi32>
    %33 = vector.broadcast %32 : vector<8x1xi32> to vector<8x256xi32>
    %34 = arith.cmpi eq, %1, %33 : vector<8x256xi32>
    %cst_7 = arith.constant 1.000000e+00 : f32
    %cst_8 = arith.constant 0.000000e+00 : f32
    %35 = vector.broadcast %cst_7 : f32 to vector<8x256xf32>
    %36 = vector.broadcast %cst_8 : f32 to vector<8x256xf32>
    %37 = arith.select %34, %35, %36 : vector<8x256xi1>, vector<8x256xf32>
    %38 = arith.addf %29, %37 : vector<8x256xf32>
    %39 = vector.extract_strided_slice %0 {offsets = [0, 4], sizes = [8, 1], strides = [1, 1]} : vector<8x8xi32> to vector<8x1xi32>
    %c128_i32 = arith.constant 128 : i32
    %40 = vector.broadcast %c128_i32 : i32 to vector<8x1xi32>
    %41 = arith.addi %39, %40 : vector<8x1xi32>
    %42 = vector.broadcast %41 : vector<8x1xi32> to vector<8x256xi32>
    %43 = arith.cmpi eq, %1, %42 : vector<8x256xi32>
    %cst_9 = arith.constant 1.000000e+00 : f32
    %cst_10 = arith.constant 0.000000e+00 : f32
    %44 = vector.broadcast %cst_9 : f32 to vector<8x256xf32>
    %45 = vector.broadcast %cst_10 : f32 to vector<8x256xf32>
    %46 = arith.select %43, %44, %45 : vector<8x256xi1>, vector<8x256xf32>
    %47 = arith.addf %38, %46 : vector<8x256xf32>
    %48 = vector.extract_strided_slice %0 {offsets = [0, 5], sizes = [8, 1], strides = [1, 1]} : vector<8x8xi32> to vector<8x1xi32>
    %c160_i32 = arith.constant 160 : i32
    %49 = vector.broadcast %c160_i32 : i32 to vector<8x1xi32>
    %50 = arith.addi %48, %49 : vector<8x1xi32>
    %51 = vector.broadcast %50 : vector<8x1xi32> to vector<8x256xi32>
    %52 = arith.cmpi eq, %1, %51 : vector<8x256xi32>
    %cst_11 = arith.constant 1.000000e+00 : f32
    %cst_12 = arith.constant 0.000000e+00 : f32
    %53 = vector.broadcast %cst_11 : f32 to vector<8x256xf32>
    %54 = vector.broadcast %cst_12 : f32 to vector<8x256xf32>
    %55 = arith.select %52, %53, %54 : vector<8x256xi1>, vector<8x256xf32>
    %56 = arith.addf %47, %55 : vector<8x256xf32>
    %57 = vector.extract_strided_slice %0 {offsets = [0, 6], sizes = [8, 1], strides = [1, 1]} : vector<8x8xi32> to vector<8x1xi32>
    %c192_i32 = arith.constant 192 : i32
    %58 = vector.broadcast %c192_i32 : i32 to vector<8x1xi32>
    %59 = arith.addi %57, %58 : vector<8x1xi32>
    %60 = vector.broadcast %59 : vector<8x1xi32> to vector<8x256xi32>
    %61 = arith.cmpi eq, %1, %60 : vector<8x256xi32>
    %cst_13 = arith.constant 1.000000e+00 : f32
    %cst_14 = arith.constant 0.000000e+00 : f32
    %62 = vector.broadcast %cst_13 : f32 to vector<8x256xf32>
    %63 = vector.broadcast %cst_14 : f32 to vector<8x256xf32>
    %64 = arith.select %61, %62, %63 : vector<8x256xi1>, vector<8x256xf32>
    %65 = arith.addf %56, %64 : vector<8x256xf32>
    %66 = vector.extract_strided_slice %0 {offsets = [0, 7], sizes = [8, 1], strides = [1, 1]} : vector<8x8xi32> to vector<8x1xi32>
    %c224_i32 = arith.constant 224 : i32
    %67 = vector.broadcast %c224_i32 : i32 to vector<8x1xi32>
    %68 = arith.addi %66, %67 : vector<8x1xi32>
    %69 = vector.broadcast %68 : vector<8x1xi32> to vector<8x256xi32>
    %70 = arith.cmpi eq, %1, %69 : vector<8x256xi32>
    %cst_15 = arith.constant 1.000000e+00 : f32
    %cst_16 = arith.constant 0.000000e+00 : f32
    %71 = vector.broadcast %cst_15 : f32 to vector<8x256xf32>
    %72 = vector.broadcast %cst_16 : f32 to vector<8x256xf32>
    %73 = arith.select %70, %71, %72 : vector<8x256xi1>, vector<8x256xf32>
    %74 = arith.addf %65, %73 : vector<8x256xf32>
    %75 = arith.truncf %74 : vector<8x256xf32> to vector<8x256xbf16>
    %c0_17 = arith.constant 0 : index
    %c0_18 = arith.constant 0 : index
    %76 = vector.load %arg2[%c0_17, %c0_18] : memref<256x128xbf16, #tpu.memory_space<vmem>>, vector<256x128xbf16>
    %cst_19 = arith.constant dense<0.000000e+00> : vector<8x128xf32>
    %77 = tpu.matmul %75, %76, %cst_19 {dimension_numbers = #tpu.dot_dimension_numbers<[1], [0], [0], [1], [0, 0, 1, 1], [], []>} : vector<8x256xbf16>, vector<256x128xbf16>, vector<8x128xf32> -> vector<8x128xf32>
    %c0_20 = arith.constant 0 : index
    %c0_21 = arith.constant 0 : index
    %78 = vector.load %arg3[%c0_20, %c0_21] : memref<1x128xf32, #tpu.memory_space<vmem>>, vector<1x128xf32>
    %79 = vector.broadcast %78 : vector<1x128xf32> to vector<8x128xf32>
    %80 = arith.addf %77, %79 : vector<8x128xf32>
    %81 = math.sin %80 : vector<8x128xf32>
    %82 = arith.truncf %81 : vector<8x128xf32> to vector<8x128xbf16>
    %c0_22 = arith.constant 0 : index
    %c0_23 = arith.constant 0 : index
    %83 = vector.load %arg4[%c0_22, %c0_23] : memref<128x128xbf16, #tpu.memory_space<vmem>>, vector<128x128xbf16>
    %cst_24 = arith.constant dense<0.000000e+00> : vector<8x128xf32>
    %84 = tpu.matmul %82, %83, %cst_24 {dimension_numbers = #tpu.dot_dimension_numbers<[1], [0], [0], [1], [0, 0, 1, 1], [], []>} : vector<8x128xbf16>, vector<128x128xbf16>, vector<8x128xf32> -> vector<8x128xf32>
    %c0_25 = arith.constant 0 : index
    %c0_26 = arith.constant 0 : index
    %85 = vector.load %arg5[%c0_25, %c0_26] : memref<1x128xf32, #tpu.memory_space<vmem>>, vector<1x128xf32>
    %86 = vector.broadcast %85 : vector<1x128xf32> to vector<8x128xf32>
    %87 = arith.addf %84, %86 : vector<8x128xf32>
    %88 = math.sin %87 : vector<8x128xf32>
    %89 = arith.truncf %88 : vector<8x128xf32> to vector<8x128xbf16>
    %c0_27 = arith.constant 0 : index
    %c0_28 = arith.constant 0 : index
    %90 = vector.load %arg6[%c0_27, %c0_28] : memref<128x128xbf16, #tpu.memory_space<vmem>>, vector<128x128xbf16>
    %cst_29 = arith.constant dense<0.000000e+00> : vector<8x128xf32>
    %91 = tpu.matmul %89, %90, %cst_29 {dimension_numbers = #tpu.dot_dimension_numbers<[1], [0], [0], [1], [0, 0, 1, 1], [], []>} : vector<8x128xbf16>, vector<128x128xbf16>, vector<8x128xf32> -> vector<8x128xf32>
    %c0_30 = arith.constant 0 : index
    %c0_31 = arith.constant 0 : index
    %92 = vector.load %arg7[%c0_30, %c0_31] : memref<1x128xf32, #tpu.memory_space<vmem>>, vector<1x128xf32>
    %93 = vector.broadcast %92 : vector<1x128xf32> to vector<8x128xf32>
    %94 = arith.addf %91, %93 : vector<8x128xf32>
    %c0_32 = arith.constant 0 : index
    %c0_33 = arith.constant 0 : index
    %95 = vector.load %arg8[%c0_32, %c0_33] : memref<8x128xf32, #tpu.memory_space<vmem>>, vector<8x128xf32>
    tpu.vector_store %arg8[%c0_32, %c0_33], %94 {strides = array<i32>} : memref<8x128xf32, #tpu.memory_space<vmem>>, vector<8x128xf32>,
    return
  }
  func.func @transform_0(%arg0: i32) -> (i32, i32) {
    %c0_i32 = arith.constant 0 : i32
    %c0_i32_0 = arith.constant 0 : i32
    return %arg0, %c0_i32 : i32, i32
  }
  func.func @transform_1(%arg0: i32) -> (i32, i32) {
    %c0_i32 = arith.constant 0 : i32
    %c0_i32_0 = arith.constant 0 : i32
    %c0_i32_1 = arith.constant 0 : i32
    return %c0_i32, %c0_i32_0 : i32, i32
  }
  func.func @transform_2(%arg0: i32) -> (i32, i32) {
    %c0_i32 = arith.constant 0 : i32
    %c0_i32_0 = arith.constant 0 : i32
    %c0_i32_1 = arith.constant 0 : i32
    return %c0_i32, %c0_i32_0 : i32, i32
  }
  func.func @transform_3(%arg0: i32) -> (i32, i32) {
    %c0_i32 = arith.constant 0 : i32
    %c0_i32_0 = arith.constant 0 : i32
    %c0_i32_1 = arith.constant 0 : i32
    return %c0_i32, %c0_i32_0 : i32, i32
  }
  func.func @transform_4(%arg0: i32) -> (i32, i32) {
    %c0_i32 = arith.constant 0 : i32
    %c0_i32_0 = arith.constant 0 : i32
    %c0_i32_1 = arith.constant 0 : i32
    return %c0_i32, %c0_i32_0 : i32, i32
  }
  func.func @transform_5(%arg0: i32) -> (i32, i32) {
    %c0_i32 = arith.constant 0 : i32
    %c0_i32_0 = arith.constant 0 : i32
    %c0_i32_1 = arith.constant 0 : i32
    return %c0_i32, %c0_i32_0 : i32, i32
  }
  func.func @transform_6(%arg0: i32) -> (i32, i32) {
    %c0_i32 = arith.constant 0 : i32
    %c0_i32_0 = arith.constant 0 : i32
    %c0_i32_1 = arith.constant 0 : i32
    return %c0_i32, %c0_i32_0 : i32, i32
  }
  func.func @transform_7(%arg0: i32) -> (i32, i32) {
    %c0_i32 = arith.constant 0 : i32
    %c0_i32_0 = arith.constant 0 : i32
    return %arg0, %c0_i32 : i32, i32
  }
}

</mosaic_0001>

<llo_original>
// kernel: tpu_custom_call.1
$region0: #{tpu_custom_call.1}
  #allocation0 [shape = 'u32[]', space=smem, size = 0x4, offset = 0x4, fixed_abs, tag = 'smem constant byte address 0x4 - core index']
  #allocation1 [shape = 'u32[144,128]{1,0:T(1,128)}', space=vmem, size = 0x12000, scoped, tag = 'internal scratch']
  %s0 = inlined_call_operand.hbm [shape: s32[8,8], index: 0, kind: input, shape index: {}]
  %s1 = inlined_call_operand.hbm [shape: bf16[256,128], index: 1, kind: input, shape index: {}]
  %s2 = inlined_call_operand.vmem [shape: f32[1,128], index: 2, kind: input, shape index: {}]
  %s3 = inlined_call_operand.hbm [shape: bf16[128,128], index: 3, kind: input, shape index: {}]
  %s4 = inlined_call_operand.vmem [shape: f32[1,128], index: 4, kind: input, shape index: {}]
  %s5 = inlined_call_operand.hbm [shape: bf16[128,128], index: 5, kind: input, shape index: {}]
  %s6 = inlined_call_operand.vmem [shape: f32[1,128], index: 6, kind: input, shape index: {}]
  %s7 = inlined_call_operand.hbm [shape: f32[8,128], index: 7, kind: output, shape index: {}]
  %s8 = sld [smem:[#allocation0]]
  $region54: #{tpu_custom_call.1} parent=0
    _
  %s10 = ssub.s32 1, %s8
  %s11 = scalar_select 0, %s10, %s8
  $region1: #{tpu_custom_call.1} parent=0
    #allocation2 [shape = 'u8[4096]{0}', space=vmem, size = 0x1000, scoped, tag = 'input window, operand 0, single buffered']
    #allocation3 [shape = 's32[1]{0}', space=sflag, size = 0x4, scoped, tag = 'scoped memory for tpu_custom_call.1']
    #allocation4 [shape = 's32[1]{0}', space=sflag, size = 0x4, scoped, tag = 'scoped memory for tpu_custom_call.1']
    #allocation5 [shape = 'u8[65536]{0}', space=vmem, size = 0x10000, scoped, tag = 'input window, operand 1, single buffered']
    #allocation6 [shape = 's32[1]{0}', space=sflag, size = 0x4, scoped, tag = 'scoped memory for tpu_custom_call.1']
    #allocation7 [shape = 'u8[32768]{0}', space=vmem, size = 0x8000, scoped, tag = 'input window, operand 3, single buffered']
    #allocation8 [shape = 'u8[32768]{0}', space=vmem, size = 0x8000, scoped, tag = 'input window, operand 5, single buffered']
    #allocation9 [shape = 's32[1]{0}', space=sflag, size = 0x4, scoped, tag = 'scoped memory for tpu_custom_call.1']
    #allocation10 [shape = 'u8[4096]{0}', space=vmem, size = 0x1000, scoped, tag = 'output window, operand 0, single buffered']
    %12 = vsyncpa [#allocation3], 0
    %13 = vsyncpa [#allocation6], 0
    %14 = vsyncpa [#allocation9], 0
    %15 = vsyncpa [#allocation4], 0
    // Predicated region
    $region2: #{tpu_custom_call.1} parent=1 // pred_check
      _
    $region3: #{tpu_custom_call.1} parent=1 // pred_check_branch
      %17 = sbr.rel (0) target = $region5
    $region4: #{tpu_custom_call.1} parent=1 // pred_region
      %s19 = ssub.s32 128, 128
      %20 = vsyncadd [#allocation3], %s19
      %s22 = sshll.u32 [#allocation2], 4
      %s23 = int_to_ptr.vmem [resolvable:$true] %s22
      %25 = dma.hbm_to_vmem [thread:$0]  %s0, 128, %s23, [#allocation3]
    $region5: #{tpu_custom_call.1} parent=1 // pred_fallthru
      _
    // Predicated region
    $region6: #{tpu_custom_call.1} parent=1 // pred_check
      _
    $region7: #{tpu_custom_call.1} parent=1 // pred_check_branch
      %27 = sbr.rel (0) target = $region9
    $region8: #{tpu_custom_call.1} parent=1 // pred_region
      %s29 = ssub.s32 2048, 2048
      %30 = vsyncadd [#allocation6], %s29
      %s31 = sshll.u32 [#allocation5], 4
      %s32 = int_to_ptr.vmem [resolvable:$true] %s31
      %37 = dma.hbm_to_vmem [thread:$0]  %s1, 2048, %s32, [#allocation6], 64, 64, 4
    $region9: #{tpu_custom_call.1} parent=1 // pred_fallthru
      _
    // Predicated region
    $region10: #{tpu_custom_call.1} parent=1 // pred_check
      _
    $region11: #{tpu_custom_call.1} parent=1 // pred_check_branch
      %39 = sbr.rel (0) target = $region13
    $region12: #{tpu_custom_call.1} parent=1 // pred_region
      _
    $region13: #{tpu_custom_call.1} parent=1 // pred_fallthru
      _
    // Predicated region
    $region14: #{tpu_custom_call.1} parent=1 // pred_check
      _
    $region15: #{tpu_custom_call.1} parent=1 // pred_check_branch
      %41 = sbr.rel (0) target = $region17
    $region16: #{tpu_custom_call.1} parent=1 // pred_region
      %s43 = ssub.s32 1024, 1024
      %44 = vsyncadd [#allocation6], %s43
      %s45 = sshll.u32 [#allocation7], 4
      %s46 = int_to_ptr.vmem [resolvable:$true] %s45
      %51 = dma.hbm_to_vmem [thread:$0]  %s3, 1024, %s46, [#allocation6], 64, 64, 4
    $region17: #{tpu_custom_call.1} parent=1 // pred_fallthru
      _
    // Predicated region
    $region18: #{tpu_custom_call.1} parent=1 // pred_check
      _
    $region19: #{tpu_custom_call.1} parent=1 // pred_check_branch
      %53 = sbr.rel (0) target = $region21
    $region20: #{tpu_custom_call.1} parent=1 // pred_region
      _
    $region21: #{tpu_custom_call.1} parent=1 // pred_fallthru
      _
    // Predicated region
    $region22: #{tpu_custom_call.1} parent=1 // pred_check
      _
    $region23: #{tpu_custom_call.1} parent=1 // pred_check_branch
      %55 = sbr.rel (0) target = $region25
    $region24: #{tpu_custom_call.1} parent=1 // pred_region
      %s57 = ssub.s32 1024, 1024
      %58 = vsyncadd [#allocation9], %s57
      %s59 = sshll.u32 [#allocation8], 4
      %s60 = int_to_ptr.vmem [resolvable:$true] %s59
      %65 = dma.hbm_to_vmem [thread:$0]  %s5, 1024, %s60, [#allocation9], 64, 64, 4
    $region25: #{tpu_custom_call.1} parent=1 // pred_fallthru
      _
    // Predicated region
    $region26: #{tpu_custom_call.1} parent=1 // pred_check
      _
    $region27: #{tpu_custom_call.1} parent=1 // pred_check_branch
      %67 = sbr.rel (0) target = $region29
    $region28: #{tpu_custom_call.1} parent=1 // pred_region
      _
    $region29: #{tpu_custom_call.1} parent=1 // pred_fallthru
      _
    // Predicated region
    $region30: #{tpu_custom_call.1} parent=1 // pred_check
      _
    $region31: #{tpu_custom_call.1} parent=1 // pred_check_branch
      %69 = sbr.rel (0) target = $region33
    $region32: #{tpu_custom_call.1} parent=1 // pred_region
      %70 = dma.done [#allocation3], 128
    $region33: #{tpu_custom_call.1} parent=1 // pred_fallthru
      _
    // Predicated region
    $region34: #{tpu_custom_call.1} parent=1 // pred_check
      _
    $region35: #{tpu_custom_call.1} parent=1 // pred_check_branch
      %72 = sbr.rel (0) target = $region37
    $region36: #{tpu_custom_call.1} parent=1 // pred_region
      %73 = dma.done [#allocation6], 2048
    $region37: #{tpu_custom_call.1} parent=1 // pred_fallthru
      _
    // Predicated region
    $region38: #{tpu_custom_call.1} parent=1 // pred_check
      _
    $region39: #{tpu_custom_call.1} parent=1 // pred_check_branch
      %75 = sbr.rel (0) target = $region41
    $region40: #{tpu_custom_call.1} parent=1 // pred_region
      %76 = dma.done [#allocation6], 1024
    $region41: #{tpu_custom_call.1} parent=1 // pred_fallthru
      _
    // Predicated region
    $region42: #{tpu_custom_call.1} parent=1 // pred_check
      _
    $region43: #{tpu_custom_call.1} parent=1 // pred_check_branch
      %78 = sbr.rel (0) target = $region45
    $region44: #{tpu_custom_call.1} parent=1 // pred_region
      %79 = dma.done [#allocation9], 1024
    $region45: #{tpu_custom_call.1} parent=1 // pred_fallthru
      _
    %v81 = vld [vmem:[#allocation2] sm:$0xff]
    %v82 = vlaneseq
    %v83 = vand.u32 %v82, 127
    %v84 = vadd.s32 %v83, 128
    %85 = vset.pattern.permute.xlu0 0
    %86 = vperm.xlu0 %85, %v81
    %v87 = vpop.permute.xlu0 %86
    %vm88 = vcmp.eq.s32.totalorder %v83, %v87
    %vm89 = vcmp.eq.s32.totalorder %v84, %v87
    %v90 = vsel %vm88, 1.0, 0.0
    %v91 = vsel %vm89, 1.0, 0.0
    %v92 = vadd.f32 %v90, 0.0
    %v93 = vadd.f32 %v91, 0.0
    %v94 = vadd.s32 %v81, 32
    %95 = vset.pattern.permute.xlu0 1
    %96 = vperm.xlu0 %95, %v94
    %v97 = vpop.permute.xlu0 %96
    %vm98 = vcmp.eq.s32.totalorder %v83, %v97
    %vm99 = vcmp.eq.s32.totalorder %v84, %v97
    %v100 = vsel %vm98, 1.0, 0.0
    %v101 = vsel %vm99, 1.0, 0.0
    %v102 = vadd.f32 %v92, %v100
    %v103 = vadd.f32 %v93, %v101
    %v104 = vadd.s32 %v81, 64
    %105 = vset.pattern.permute.xlu0 2
    %106 = vperm.xlu0 %105, %v104
    %v107 = vpop.permute.xlu0 %106
    %vm108 = vcmp.eq.s32.totalorder %v83, %v107
    %vm109 = vcmp.eq.s32.totalorder %v84, %v107
    %v110 = vsel %vm108, 1.0, 0.0
    %v111 = vsel %vm109, 1.0, 0.0
    %v112 = vadd.f32 %v102, %v110
    %v113 = vadd.f32 %v103, %v111
    %v114 = vadd.s32 %v81, 96
    %115 = vset.pattern.permute.xlu0 3
    %116 = vperm.xlu0 %115, %v114
    %v117 = vpop.permute.xlu0 %116
    %vm118 = vcmp.eq.s32.totalorder %v83, %v117
    %vm119 = vcmp.eq.s32.totalorder %v84, %v117
    %v120 = vsel %vm118, 1.0, 0.0
    %v121 = vsel %vm119, 1.0, 0.0
    %v122 = vadd.f32 %v112, %v120
    %v123 = vadd.f32 %v113, %v121
    %v124 = vadd.s32 %v81, 128
    %125 = vset.pattern.permute.xlu0 4
    %126 = vperm.xlu0 %125, %v124
    %v127 = vpop.permute.xlu0 %126
    %vm128 = vcmp.eq.s32.totalorder %v83, %v127
    %vm129 = vcmp.eq.s32.totalorder %v84, %v127
    %v130 = vsel %vm128, 1.0, 0.0
    %v131 = vsel %vm129, 1.0, 0.0
    %v132 = vadd.f32 %v122, %v130
    %v133 = vadd.f32 %v123, %v131
    %v134 = vadd.s32 %v81, 160
    %135 = vset.pattern.permute.xlu0 5
    %136 = vperm.xlu0 %135, %v134
    %v137 = vpop.permute.xlu0 %136
    %vm138 = vcmp.eq.s32.totalorder %v83, %v137
    %vm139 = vcmp.eq.s32.totalorder %v84, %v137
    %v140 = vsel %vm138, 1.0, 0.0
    %v141 = vsel %vm139, 1.0, 0.0
    %v142 = vadd.f32 %v132, %v140
    %v143 = vadd.f32 %v133, %v141
    %v144 = vadd.s32 %v81, 192
    %145 = vset.pattern.permute.xlu0 6
    %146 = vperm.xlu0 %145, %v144
    %v147 = vpop.permute.xlu0 %146
    %vm148 = vcmp.eq.s32.totalorder %v83, %v147
    %vm149 = vcmp.eq.s32.totalorder %v84, %v147
    %v150 = vsel %vm148, 1.0, 0.0
    %v151 = vsel %vm149, 1.0, 0.0
    %v152 = vadd.f32 %v142, %v150
    %v153 = vadd.f32 %v143, %v151
    %v154 = vadd.s32 %v81, 224
    %155 = vset.pattern.permute.xlu0 7
    %156 = vperm.xlu0 %155, %v154
    %v157 = vpop.permute.xlu0 %156
    %vm158 = vcmp.eq.s32.totalorder %v83, %v157
    %vm159 = vcmp.eq.s32.totalorder %v84, %v157
    %v160 = vsel %vm158, 1.0, 0.0
    %v161 = vsel %vm159, 1.0, 0.0
    %v162 = vadd.f32 %v152, %v160
    %v163 = vadd.f32 %v153, %v161
    %v164 = vpack.c.bf16 %v162, %v162
    %v165 = vpack.c.bf16 %v163, %v163
    %v166 = vld [vmem:[#allocation5] sm:$0xf]
    %v167 = vld [vmem:[#allocation5 + $0x4] sm:$0xf]
    %v168 = vld [vmem:[#allocation5 + $0x8] sm:$0xf]
    %v169 = vld [vmem:[#allocation5 + $0xc] sm:$0xf]
    %v170 = vld [vmem:[#allocation5 + $0x10] sm:$0xf]
    %v171 = vld [vmem:[#allocation5 + $0x14] sm:$0xf]
    %v172 = vld [vmem:[#allocation5 + $0x18] sm:$0xf]
    %v173 = vld [vmem:[#allocation5 + $0x1c] sm:$0xf]
    %v174 = vld [vmem:[#allocation5 + $0x20] sm:$0xf]
    %v175 = vld [vmem:[#allocation5 + $0x24] sm:$0xf]
    %v176 = vld [vmem:[#allocation5 + $0x28] sm:$0xf]
    %v177 = vld [vmem:[#allocation5 + $0x2c] sm:$0xf]
    %v178 = vld [vmem:[#allocation5 + $0x30] sm:$0xf]
    %v179 = vld [vmem:[#allocation5 + $0x34] sm:$0xf]
    %v180 = vld [vmem:[#allocation5 + $0x38] sm:$0xf]
    %v181 = vld [vmem:[#allocation5 + $0x3c] sm:$0xf]
    %v182 = vld [vmem:[#allocation5 + $0x40] sm:$0xf]
    %v183 = vld [vmem:[#allocation5 + $0x44] sm:$0xf]
    %v184 = vld [vmem:[#allocation5 + $0x48] sm:$0xf]
    %v185 = vld [vmem:[#allocation5 + $0x4c] sm:$0xf]
    %v186 = vld [vmem:[#allocation5 + $0x50] sm:$0xf]
    %v187 = vld [vmem:[#allocation5 + $0x54] sm:$0xf]
    %v188 = vld [vmem:[#allocation5 + $0x58] sm:$0xf]
    %v189 = vld [vmem:[#allocation5 + $0x5c] sm:$0xf]
    %v190 = vld [vmem:[#allocation5 + $0x60] sm:$0xf]
    %v191 = vld [vmem:[#allocation5 + $0x64] sm:$0xf]
    %v192 = vld [vmem:[#allocation5 + $0x68] sm:$0xf]
    %v193 = vld [vmem:[#allocation5 + $0x6c] sm:$0xf]
    %v194 = vld [vmem:[#allocation5 + $0x70] sm:$0xf]
    %v195 = vld [vmem:[#allocation5 + $0x74] sm:$0xf]
    %v196 = vld [vmem:[#allocation5 + $0x78] sm:$0xf]
    %v197 = vld [vmem:[#allocation5 + $0x7c] sm:$0xf]
    %v198 = vld [vmem:[%s2] sm:$0x1]
    %v200 = vlaneseq
    %v201 = vshrl.u32 %v200, 7
    %v202 = vsub.s32 0, %v201
    %v203 = vrot.slane %v198, %v202
    %v237 = vunpack.c.l.b16 %v166
    %v238 = vunpack.c.l.b16 %v167
    %v239 = vunpack.c.l.b16 %v168
    %v240 = vunpack.c.l.b16 %v169
    %v241 = vunpack.c.l.b16 %v170
    %v242 = vunpack.c.l.b16 %v171
    %v243 = vunpack.c.l.b16 %v172
    %v244 = vunpack.c.l.b16 %v173
    %v245 = vunpack.c.l.b16 %v174
    %v246 = vunpack.c.l.b16 %v175
    %v247 = vunpack.c.l.b16 %v176
    %v248 = vunpack.c.l.b16 %v177
    %v249 = vunpack.c.l.b16 %v178
    %v250 = vunpack.c.l.b16 %v179
    %v251 = vunpack.c.l.b16 %v180
    %v252 = vunpack.c.l.b16 %v181
    %v253 = vunpack.c.l.b16 %v182
    %v254 = vunpack.c.l.b16 %v183
    %v255 = vunpack.c.l.b16 %v184
    %v256 = vunpack.c.l.b16 %v185
    %v257 = vunpack.c.l.b16 %v186
    %v258 = vunpack.c.l.b16 %v187
    %v259 = vunpack.c.l.b16 %v188
    %v260 = vunpack.c.l.b16 %v189
    %v261 = vunpack.c.l.b16 %v190
    %v262 = vunpack.c.l.b16 %v191
    %v263 = vunpack.c.l.b16 %v192
    %v264 = vunpack.c.l.b16 %v193
    %v265 = vunpack.c.l.b16 %v194
    %v266 = vunpack.c.l.b16 %v195
    %v267 = vunpack.c.l.b16 %v196
    %v268 = vunpack.c.l.b16 %v197
    %v269 = vpack.c.b16 %v238, %v237
    %v270 = vpack.c.b16 %v240, %v239
    %v271 = vpack.c.b16 %v242, %v241
    %v272 = vpack.c.b16 %v244, %v243
    %v273 = vpack.c.b16 %v246, %v245
    %v274 = vpack.c.b16 %v248, %v247
    %v275 = vpack.c.b16 %v250, %v249
    %v276 = vpack.c.b16 %v252, %v251
    %v277 = vpack.c.b16 %v254, %v253
    %v278 = vpack.c.b16 %v256, %v255
    %v279 = vpack.c.b16 %v258, %v257
    %v280 = vpack.c.b16 %v260, %v259
    %v281 = vpack.c.b16 %v262, %v261
    %v282 = vpack.c.b16 %v264, %v263
    %v283 = vpack.c.b16 %v266, %v265
    %v284 = vpack.c.b16 %v268, %v267
    %301 = vmatprep.subr.bf16.mxu0 0
    %302 = vmatpush1.bf16.msra.mxu0 %v276
    %303 = vmatprep.subr.bf16.mxu0 0
    %304 = vmatpush1.bf16.msra.mxu0 %v275
    %305 = vmatprep.subr.bf16.mxu0 0
    %306 = vmatpush1.bf16.msra.mxu0 %v274
    %307 = vmatprep.subr.bf16.mxu0 0
    %308 = vmatpush1.bf16.msra.mxu0 %v273
    %309 = vmatprep.subr.bf16.mxu0 0
    %310 = vmatpush1.bf16.msra.mxu0 %v272
    %311 = vmatprep.subr.bf16.mxu0 0
    %312 = vmatpush1.bf16.msra.mxu0 %v271
    %313 = vmatprep.subr.bf16.mxu0 0
    %314 = vmatpush1.bf16.msra.mxu0 %v270
    %315 = vmatprep.subr.bf16.mxu0 0
    %316 = vmatpush1.bf16.msra.mxu0 %v269
    %317 = vmatprep.subr.bf16.mxu0 0
    %318 = vmatpush2.bf16.msra.mxu0 %v284
    %319 = vmatprep.subr.bf16.mxu0 0
    %320 = vmatpush2.bf16.msra.mxu0 %v283
    %321 = vmatprep.subr.bf16.mxu0 0
    %322 = vmatpush2.bf16.msra.mxu0 %v282
    %323 = vmatprep.subr.bf16.mxu0 0
    %324 = vmatpush2.bf16.msra.mxu0 %v281
    %325 = vmatprep.subr.bf16.mxu0 0
    %326 = vmatpush2.bf16.msra.mxu0 %v280
    %327 = vmatprep.subr.bf16.mxu0 0
    %328 = vmatpush2.bf16.msra.mxu0 %v279
    %329 = vmatprep.subr.bf16.mxu0 0
    %330 = vmatpush2.bf16.msra.mxu0 %v278
    %331 = vmatprep.subr.bf16.mxu0 0
    %332 = vmatpush2.bf16.msra.mxu0 %v277
    %333 = vmatprep.mubr.bf16.mxu0 %v165
    %334 = vmatmul.mubr.bf16.gmra.mxu0 %v164
    %v335 = vpop.f32.mrf.mxu0
    %v336 = vadd.f32 %v203, %v335
    %v337 = vpop.f32.mrf.mxu0
    %v338 = vpop.f32.mrf.mxu0
    %v339 = vpop.f32.mrf.mxu0
    %340 = vdwg.mxu0
    %v341 = vand.u32 2147483647, %v336
    %vm342 = vcmp.le.f32.partialorder %v341, 0.7853982
    %vm343 = vcmp.lt.s32.totalorder %v336, 0
    %v344 = vand.u32 %v336, 2139095040
    %v345 = vshrl.u32 %v344, 23
    %v346 = vsub.s32 %v345, 127
    %v347 = vand.u32 2147483647, %v336
    %v348 = vand.u32 %v347, 8388607
    %v349 = vor.u32 %v348, 8388608
    %v350 = vsub.s32 0, %v349
    %v351 = vadd.s32 %v346, 1
    %vm352 = vcmp.gt.s32.totalorder %v351, 0
    %v353 = vsel %vm352, %v351, 0
    %v354 = vshrl.u32 %v353, 5
    %v355 = vand.u32 %v353, 31
    %v356 = vsub.s32 32, %v355
    %v357 = vshrl.u32 683565275, %v356
    %v358 = vshll.u32 683565275, %v355
    %v359 = vshrl.u32 2475754826, %v356
    %v360 = vor.u32 %v358, %v359
    %v361 = vshll.u32 2475754826, %v355
    %v362 = vshrl.u32 2131351028, %v356
    %v363 = vor.u32 %v361, %v362
    %v364 = vshll.u32 2131351028, %v355
    %v365 = vshrl.u32 2102212464, %v356
    %v366 = vor.u32 %v364, %v365
    %v367 = vshll.u32 2102212464, %v355
    %v368 = vshrl.u32 920167782, %v356
    %v369 = vor.u32 %v367, %v368
    %v370 = vshll.u32 920167782, %v355
    %v371 = vshrl.u32 1326507024, %v356
    %v372 = vor.u32 %v370, %v371
    %vm373 = vcmp.lt.s32.totalorder %v354, 1
    %vm374 = vcmp.lt.s32.totalorder %v354, 2
    %vm375 = vcmp.lt.s32.totalorder %v354, 3
    %vm376 = vcmp.lt.s32.totalorder %v354, 4
    %v377 = vsel %vm373, %v357, %v360
    %v378 = vsel %vm376, %v366, 2102212464
    %v379 = vsel %vm375, %v363, %v378
    %v380 = vsel %vm374, %v377, %v379
    %v381 = vsel %vm373, %v360, %v363
    %v382 = vsel %vm376, %v369, 920167782
    %v383 = vsel %vm375, %v366, %v382
    %v384 = vsel %vm374, %v381, %v383
    %v385 = vsel %vm373, %v363, %v366
    %v386 = vsel %vm376, %v372, 1326507024
    %v387 = vsel %vm375, %v369, %v386
    %v388 = vsel %vm374, %v385, %v387
    %v389 = vshll.u32 %v349, 8
    %v390 = vmul.u32.u64.compose %v389, %v388
    %v391 = vextract.low.u32 %v390
    %v392 = vextract.high.u32 %v390
    %v393 = vmul.u32.u64.compose %v389, %v384
    %v394 = vextract.low.u32 %v393
    %v395 = vextract.high.u32 %v393
    %v396 = vmul.u32 %v389, %v380
    %v397 = vadd.s32 %v392, %v394
    %vm398 = vc.u32 %v392, %v394
    %v399 = vadd.s32 %v395, 1
    %v400 = vsel %vm398, %v399, %v395
    %v401 = vadd.s32 %v396, %v400
    %v402 = vadd.s32 %v401, 536870912
    %v403 = vshrl.u32 %v402, 30
    %v404 = vshll.u32 %v403, 30
    %v405 = vsub.s32 %v401, %v404
    %vm406 = vcmp.lt.s32.totalorder %v405, 0
    %v407 = vsub.s32 0, %v405
    %v408 = vsel %vm406, %v407, %v405
    %v409 = vclz %v408
    %v410 = vsub.s32 %v409, 2
    %vm411 = vcmp.gt.s32.totalorder 0, %v410
    %v412 = vsel %vm411, 0, %v410
    %v413 = vsub.s32 32, %v412
    %v414 = vshll.u32 %v405, %v412
    %v415 = vshrl.u32 %v397, %v413
    %v416 = vor.u32 %v414, %v415
    %v417 = vsub.s32 4294967266, %v412
    %v418 = vadd.s32 %v417, 127
    %v419 = vshll.u32 %v418, 23
    %v420 = vor.u32 4788187, %v419
    %v421 = vand.u32 2147483647, %v420
    %v423 = vcvt.s32.f32 %v416
    %v424 = vmul.f32 %v423, %v421
    %v425 = vxor.u32 %v424, 2147483648
    %v426 = vsel %vm343, %v425, %v424
    %v427 = vsub.s32 4, %v403
    %v428 = vsel %vm343, %v427, %v403
    %v429 = vsel %vm342, %v336, %v426
    %v430 = vsel %vm342, 0, %v428
    %v431 = vcosq.f32.pop %v429
    %v432 = vsinq.f32.pop %v429
    %vm433 = vweird.f32 %v336
    %v434 = vadd.s32 %v430, 3
    %v435 = vand.u32 %v434, 3
    %vm436 = vcmp.lt.s32.totalorder %v435, 2
    %vm437 = vcmp.eq.s32.totalorder %v435, 0
    %v438 = vxor.u32 %v432, 2147483648
    %v439 = vsel %vm437, %v431, %v438
    %vm440 = vcmp.eq.s32.totalorder %v435, 2
    %v441 = vxor.u32 %v431, 2147483648
    %v442 = vsel %vm440, %v441, %v432
    %v443 = vsel %vm436, %v439, %v442
    %v444 = vsel %vm433, nan, %v443
    %v445 = vpack.c.bf16 %v444, %v444
    %v446 = vld [vmem:[#allocation7] sm:$0xf]
    %v447 = vld [vmem:[#allocation7 + $0x4] sm:$0xf]
    %v448 = vld [vmem:[#allocation7 + $0x8] sm:$0xf]
    %v449 = vld [vmem:[#allocation7 + $0xc] sm:$0xf]
    %v450 = vld [vmem:[#allocation7 + $0x10] sm:$0xf]
    %v451 = vld [vmem:[#allocation7 + $0x14] sm:$0xf]
    %v452 = vld [vmem:[#allocation7 + $0x18] sm:$0xf]
    %v453 = vld [vmem:[#allocation7 + $0x1c] sm:$0xf]
    %v454 = vld [vmem:[#allocation7 + $0x20] sm:$0xf]
    %v455 = vld [vmem:[#allocation7 + $0x24] sm:$0xf]
    %v456 = vld [vmem:[#allocation7 + $0x28] sm:$0xf]
    %v457 = vld [vmem:[#allocation7 + $0x2c] sm:$0xf]
    %v458 = vld [vmem:[#allocation7 + $0x30] sm:$0xf]
    %v459 = vld [vmem:[#allocation7 + $0x34] sm:$0xf]
    %v460 = vld [vmem:[#allocation7 + $0x38] sm:$0xf]
    %v461 = vld [vmem:[#allocation7 + $0x3c] sm:$0xf]
    %v462 = vld [vmem:[%s4] sm:$0x1]
    %v464 = vlaneseq
    %v465 = vshrl.u32 %v464, 7
    %v466 = vsub.s32 0, %v465
    %v467 = vrot.slane %v462, %v466
    %v485 = vunpack.c.l.b16 %v446
    %v486 = vunpack.c.l.b16 %v447
    %v487 = vunpack.c.l.b16 %v448
    %v488 = vunpack.c.l.b16 %v449
    %v489 = vunpack.c.l.b16 %v450
    %v490 = vunpack.c.l.b16 %v451
    %v491 = vunpack.c.l.b16 %v452
    %v492 = vunpack.c.l.b16 %v453
    %v493 = vunpack.c.l.b16 %v454
    %v494 = vunpack.c.l.b16 %v455
    %v495 = vunpack.c.l.b16 %v456
    %v496 = vunpack.c.l.b16 %v457
    %v497 = vunpack.c.l.b16 %v458
    %v498 = vunpack.c.l.b16 %v459
    %v499 = vunpack.c.l.b16 %v460
    %v500 = vunpack.c.l.b16 %v461
    %v501 = vpack.c.b16 %v486, %v485
    %v502 = vpack.c.b16 %v488, %v487
    %v503 = vpack.c.b16 %v490, %v489
    %v504 = vpack.c.b16 %v492, %v491
    %v505 = vpack.c.b16 %v494, %v493
    %v506 = vpack.c.b16 %v496, %v495
    %v507 = vpack.c.b16 %v498, %v497
    %v508 = vpack.c.b16 %v500, %v499
    %517 = vmatprep.subr.bf16.mxu0 0
    %518 = vmatpush1.bf16.msra.mxu0 %v508
    %519 = vmatprep.subr.bf16.mxu0 0
    %520 = vmatpush1.bf16.msra.mxu0 %v507
    %521 = vmatprep.subr.bf16.mxu0 0
    %522 = vmatpush1.bf16.msra.mxu0 %v506
    %523 = vmatprep.subr.bf16.mxu0 0
    %524 = vmatpush1.bf16.msra.mxu0 %v505
    %525 = vmatprep.subr.bf16.mxu0 0
    %526 = vmatpush1.bf16.msra.mxu0 %v504
    %527 = vmatprep.subr.bf16.mxu0 0
    %528 = vmatpush1.bf16.msra.mxu0 %v503
    %529 = vmatprep.subr.bf16.mxu0 0
    %530 = vmatpush1.bf16.msra.mxu0 %v502
    %531 = vmatprep.subr.bf16.mxu0 0
    %532 = vmatpush1.bf16.msra.mxu0 %v501
    %533 = vmatprep.subr.bf16.mxu0 0
    %534 = vmatpush2.bf16.msra.mxu0 0
    %535 = vmatprep.subr.bf16.mxu0 0
    %536 = vmatpush2.bf16.msra.mxu0 0
    %537 = vmatprep.subr.bf16.mxu0 0
    %538 = vmatpush2.bf16.msra.mxu0 0
    %539 = vmatprep.subr.bf16.mxu0 0
    %540 = vmatpush2.bf16.msra.mxu0 0
    %541 = vmatprep.subr.bf16.mxu0 0
    %542 = vmatpush2.bf16.msra.mxu0 0
    %543 = vmatprep.subr.bf16.mxu0 0
    %544 = vmatpush2.bf16.msra.mxu0 0
    %545 = vmatprep.subr.bf16.mxu0 0
    %546 = vmatpush2.bf16.msra.mxu0 0
    %547 = vmatprep.subr.bf16.mxu0 0
    %548 = vmatpush2.bf16.msra.mxu0 0
    %549 = vmatprep.mubr.bf16.mxu0 0
    %550 = vmatmul.mubr.bf16.gmra.mxu0 %v445
    %v551 = vpop.f32.mrf.mxu0
    %v552 = vadd.f32 %v467, %v551
    %v553 = vpop.f32.mrf.mxu0
    %v554 = vpop.f32.mrf.mxu0
    %v555 = vpop.f32.mrf.mxu0
    %556 = vdwg.mxu0
    %v557 = vand.u32 2147483647, %v552
    %vm558 = vcmp.le.f32.partialorder %v557, 0.7853982
    %vm559 = vcmp.lt.s32.totalorder %v552, 0
    %v560 = vand.u32 %v552, 2139095040
    %v561 = vshrl.u32 %v560, 23
    %v562 = vsub.s32 %v561, 127
    %v563 = vand.u32 2147483647, %v552
    %v564 = vand.u32 %v563, 8388607
    %v565 = vor.u32 %v564, 8388608
    %v566 = vsub.s32 0, %v565
    %v567 = vadd.s32 %v562, 1
    %vm568 = vcmp.gt.s32.totalorder %v567, 0
    %v569 = vsel %vm568, %v567, 0
    %v570 = vshrl.u32 %v569, 5
    %v571 = vand.u32 %v569, 31
    %v572 = vsub.s32 32, %v571
    %v573 = vshrl.u32 683565275, %v572
    %v574 = vshll.u32 683565275, %v571
    %v575 = vshrl.u32 2475754826, %v572
    %v576 = vor.u32 %v574, %v575
    %v577 = vshll.u32 2475754826, %v571
    %v578 = vshrl.u32 2131351028, %v572
    %v579 = vor.u32 %v577, %v578
    %v580 = vshll.u32 2131351028, %v571
    %v581 = vshrl.u32 2102212464, %v572
    %v582 = vor.u32 %v580, %v581
    %v583 = vshll.u32 2102212464, %v571
    %v584 = vshrl.u32 920167782, %v572
    %v585 = vor.u32 %v583, %v584
    %v586 = vshll.u32 920167782, %v571
    %v587 = vshrl.u32 1326507024, %v572
    %v588 = vor.u32 %v586, %v587
    %vm589 = vcmp.lt.s32.totalorder %v570, 1
    %vm590 = vcmp.lt.s32.totalorder %v570, 2
    %vm591 = vcmp.lt.s32.totalorder %v570, 3
    %vm592 = vcmp.lt.s32.totalorder %v570, 4
    %v593 = vsel %vm589, %v573, %v576
    %v594 = vsel %vm592, %v582, 2102212464
    %v595 = vsel %vm591, %v579, %v594
    %v596 = vsel %vm590, %v593, %v595
    %v597 = vsel %vm589, %v576, %v579
    %v598 = vsel %vm592, %v585, 920167782
    %v599 = vsel %vm591, %v582, %v598
    %v600 = vsel %vm590, %v597, %v599
    %v601 = vsel %vm589, %v579, %v582
    %v602 = vsel %vm592, %v588, 1326507024
    %v603 = vsel %vm591, %v585, %v602
    %v604 = vsel %vm590, %v601, %v603
    %v605 = vshll.u32 %v565, 8
    %v606 = vmul.u32.u64.compose %v605, %v604
    %v607 = vextract.low.u32 %v606
    %v608 = vextract.high.u32 %v606
    %v609 = vmul.u32.u64.compose %v605, %v600
    %v610 = vextract.low.u32 %v609
    %v611 = vextract.high.u32 %v609
    %v612 = vmul.u32 %v605, %v596
    %v613 = vadd.s32 %v608, %v610
    %vm614 = vc.u32 %v608, %v610
    %v615 = vadd.s32 %v611, 1
    %v616 = vsel %vm614, %v615, %v611
    %v617 = vadd.s32 %v612, %v616
    %v618 = vadd.s32 %v617, 536870912
    %v619 = vshrl.u32 %v618, 30
    %v620 = vshll.u32 %v619, 30
    %v621 = vsub.s32 %v617, %v620
    %vm622 = vcmp.lt.s32.totalorder %v621, 0
    %v623 = vsub.s32 0, %v621
    %v624 = vsel %vm622, %v623, %v621
    %v625 = vclz %v624
    %v626 = vsub.s32 %v625, 2
    %vm627 = vcmp.gt.s32.totalorder 0, %v626
    %v628 = vsel %vm627, 0, %v626
    %v629 = vsub.s32 32, %v628
    %v630 = vshll.u32 %v621, %v628
    %v631 = vshrl.u32 %v613, %v629
    %v632 = vor.u32 %v630, %v631
    %v633 = vsub.s32 4294967266, %v628
    %v634 = vadd.s32 %v633, 127
    %v635 = vshll.u32 %v634, 23
    %v636 = vor.u32 4788187, %v635
    %v637 = vand.u32 2147483647, %v636
    %v639 = vcvt.s32.f32 %v632
    %v640 = vmul.f32 %v639, %v637
    %v641 = vxor.u32 %v640, 2147483648
    %v642 = vsel %vm559, %v641, %v640
    %v643 = vsub.s32 4, %v619
    %v644 = vsel %vm559, %v643, %v619
    %v645 = vsel %vm558, %v552, %v642
    %v646 = vsel %vm558, 0, %v644
    %v647 = vcosq.f32.pop %v645
    %v648 = vsinq.f32.pop %v645
    %vm649 = vweird.f32 %v552
    %v650 = vadd.s32 %v646, 3
    %v651 = vand.u32 %v650, 3
    %vm652 = vcmp.lt.s32.totalorder %v651, 2
    %vm653 = vcmp.eq.s32.totalorder %v651, 0
    %v654 = vxor.u32 %v648, 2147483648
    %v655 = vsel %vm653, %v647, %v654
    %vm656 = vcmp.eq.s32.totalorder %v651, 2
    %v657 = vxor.u32 %v647, 2147483648
    %v658 = vsel %vm656, %v657, %v648
    %v659 = vsel %vm652, %v655, %v658
    %v660 = vsel %vm649, nan, %v659
    %v661 = vpack.c.bf16 %v660, %v660
    %v662 = vld [vmem:[#allocation8] sm:$0xf]
    %v663 = vld [vmem:[#allocation8 + $0x4] sm:$0xf]
    %v664 = vld [vmem:[#allocation8 + $0x8] sm:$0xf]
    %v665 = vld [vmem:[#allocation8 + $0xc] sm:$0xf]
    %v666 = vld [vmem:[#allocation8 + $0x10] sm:$0xf]
    %v667 = vld [vmem:[#allocation8 + $0x14] sm:$0xf]
    %v668 = vld [vmem:[#allocation8 + $0x18] sm:$0xf]
    %v669 = vld [vmem:[#allocation8 + $0x1c] sm:$0xf]
    %v670 = vld [vmem:[#allocation8 + $0x20] sm:$0xf]
    %v671 = vld [vmem:[#allocation8 + $0x24] sm:$0xf]
    %v672 = vld [vmem:[#allocation8 + $0x28] sm:$0xf]
    %v673 = vld [vmem:[#allocation8 + $0x2c] sm:$0xf]
    %v674 = vld [vmem:[#allocation8 + $0x30] sm:$0xf]
    %v675 = vld [vmem:[#allocation8 + $0x34] sm:$0xf]
    %v676 = vld [vmem:[#allocation8 + $0x38] sm:$0xf]
    %v677 = vld [vmem:[#allocation8 + $0x3c] sm:$0xf]
    %v678 = vld [vmem:[%s6] sm:$0x1]
    %v680 = vlaneseq
    %v681 = vshrl.u32 %v680, 7
    %v682 = vsub.s32 0, %v681
    %v683 = vrot.slane %v678, %v682
    %v701 = vunpack.c.l.b16 %v662
    %v702 = vunpack.c.l.b16 %v663
    %v703 = vunpack.c.l.b16 %v664
    %v704 = vunpack.c.l.b16 %v665
    %v705 = vunpack.c.l.b16 %v666
    %v706 = vunpack.c.l.b16 %v667
    %v707 = vunpack.c.l.b16 %v668
    %v708 = vunpack.c.l.b16 %v669
    %v709 = vunpack.c.l.b16 %v670
    %v710 = vunpack.c.l.b16 %v671
    %v711 = vunpack.c.l.b16 %v672
    %v712 = vunpack.c.l.b16 %v673
    %v713 = vunpack.c.l.b16 %v674
    %v714 = vunpack.c.l.b16 %v675
    %v715 = vunpack.c.l.b16 %v676
    %v716 = vunpack.c.l.b16 %v677
    %v717 = vpack.c.b16 %v702, %v701
    %v718 = vpack.c.b16 %v704, %v703
    %v719 = vpack.c.b16 %v706, %v705
    %v720 = vpack.c.b16 %v708, %v707
    %v721 = vpack.c.b16 %v710, %v709
    %v722 = vpack.c.b16 %v712, %v711
    %v723 = vpack.c.b16 %v714, %v713
    %v724 = vpack.c.b16 %v716, %v715
    %733 = vmatprep.subr.bf16.mxu0 0
    %734 = vmatpush1.bf16.msra.mxu0 %v724
    %735 = vmatprep.subr.bf16.mxu0 0
    %736 = vmatpush1.bf16.msra.mxu0 %v723
    %737 = vmatprep.subr.bf16.mxu0 0
    %738 = vmatpush1.bf16.msra.mxu0 %v722
    %739 = vmatprep.subr.bf16.mxu0 0
    %740 = vmatpush1.bf16.msra.mxu0 %v721
    %741 = vmatprep.subr.bf16.mxu0 0
    %742 = vmatpush1.bf16.msra.mxu0 %v720
    %743 = vmatprep.subr.bf16.mxu0 0
    %744 = vmatpush1.bf16.msra.mxu0 %v719
    %745 = vmatprep.subr.bf16.mxu0 0
    %746 = vmatpush1.bf16.msra.mxu0 %v718
    %747 = vmatprep.subr.bf16.mxu0 0
    %748 = vmatpush1.bf16.msra.mxu0 %v717
    %749 = vmatprep.subr.bf16.mxu0 0
    %750 = vmatpush2.bf16.msra.mxu0 0
    %751 = vmatprep.subr.bf16.mxu0 0
    %752 = vmatpush2.bf16.msra.mxu0 0
    %753 = vmatprep.subr.bf16.mxu0 0
    %754 = vmatpush2.bf16.msra.mxu0 0
    %755 = vmatprep.subr.bf16.mxu0 0
    %756 = vmatpush2.bf16.msra.mxu0 0
    %757 = vmatprep.subr.bf16.mxu0 0
    %758 = vmatpush2.bf16.msra.mxu0 0
    %759 = vmatprep.subr.bf16.mxu0 0
    %760 = vmatpush2.bf16.msra.mxu0 0
    %761 = vmatprep.subr.bf16.mxu0 0
    %762 = vmatpush2.bf16.msra.mxu0 0
    %763 = vmatprep.subr.bf16.mxu0 0
    %764 = vmatpush2.bf16.msra.mxu0 0
    %765 = vmatprep.mubr.bf16.mxu0 0
    %766 = vmatmul.mubr.bf16.gmra.mxu0 %v661
    %v767 = vpop.f32.mrf.mxu0
    %v768 = vadd.f32 %v683, %v767
    %v769 = vpop.f32.mrf.mxu0
    %v770 = vpop.f32.mrf.mxu0
    %v771 = vpop.f32.mrf.mxu0
    %772 = vdwg.mxu0
    %773 = vst [vmem:[#allocation10] sm:$0xff] %v768
    // Predicated region
    $region46: #{tpu_custom_call.1} parent=1 // pred_check
      _
    $region47: #{tpu_custom_call.1} parent=1 // pred_check_branch
      %775 = sbr.rel (0) target = $region49
    $region48: #{tpu_custom_call.1} parent=1 // pred_region
      %s777 = ssub.s32 128, 128
      %778 = vsyncadd [#allocation4], %s777
      %s780 = sshll.u32 [#allocation10], 4
      %s781 = int_to_ptr.vmem [resolvable:$true] %s780
      %783 = dma.vmem_to_hbm [thread:$0]  %s781, 128, %s7, [#allocation4]
    $region49: #{tpu_custom_call.1} parent=1 // pred_fallthru
      _
    // Predicated region
    $region50: #{tpu_custom_call.1} parent=1 // pred_check
      _
    $region51: #{tpu_custom_call.1} parent=1 // pred_check_branch
      %785 = sbr.rel (0) target = $region53
    $region52: #{tpu_custom_call.1} parent=1 // pred_region
      %786 = dma.done [#allocation4], 128
    $region53: #{tpu_custom_call.1} parent=1 // pred_fallthru
      _
    %787 = vsyncpa [#allocation3], 1
    %788 = vsyncpa [#allocation6], 1
    %789 = vsyncpa [#allocation9], 1
    %790 = vsyncpa [#allocation4], 1

</llo_original>
